<compile_context>
chip_gen: v5e
topology: v5e:2x2
jax: 0.10.0
libtpu: 0.0.40
codegen_flags: <defaults>
</compile_context>

<pallas_src>
import math

import jax
import jax.numpy as jnp
from jax.experimental import pallas as pl
from jax.experimental.pallas import tpu as pltpu


def _make_mdn_loss_kernel(num_gaussians: int, output_dim: int, norm_const: float):
    ng, c = num_gaussians, output_dim

    def kernel(alpha_ref, sigma_ref, mu_ref, tgt_ref, nll_ref):
        # alpha_ref, sigma_ref : [TB, ng]
        # mu_ref               : [TB, ng * c]
        # tgt_ref              : [TB, c]
        # nll_ref              : [TB, 1]   per-row -log(prob)
        t = tgt_ref[...]                          # [TB, c]
        sigma = sigma_ref[...]                    # [TB, ng]
        alpha = alpha_ref[...]                    # [TB, ng]

        # norm_sq[b, g] = sum_j (mu[b, g*c + j] - t[b, j])^2
        # Unrolled over the small static gaussian axis; exact f32 VPU/XLU math,
        # all ng*c lanes fit in one vreg so the lane slices are cheap.
        cols = []
        for g in range(ng):
            d = mu_ref[:, g * c:(g + 1) * c] - t
            cols.append(jnp.sum(d * d, axis=1, keepdims=True))   # [TB, 1]
        norm_sq = jnp.concatenate(cols, axis=1)                   # [TB, ng]

        inv_sigma_sq = 1.0 / (sigma * sigma)
        div = -0.5 * norm_sq * inv_sigma_sq

        # sigma ** c with a static integer exponent -> unrolled multiplies.
        sigma_pow = sigma
        for _ in range(c - 1):
            sigma_pow = sigma_pow * sigma

        final = jnp.exp(div) * norm_const * (1.0 / sigma_pow)
        weighted = final * alpha
        prob = jnp.sum(weighted, axis=1, keepdims=True)           # [TB, 1]
        nll_ref[...] = -jnp.log(prob)

    return kernel


def mdn_loss_forward(dist_params, targets, num_gaussians, output_dim,
                     block_b=1024):
    """Pallas implementation of MDNLoss.forward.

    dist_params: {'alpha': [B, ng], 'sigma': [B, ng], 'mu': [B, ng*c]}
    targets:     [B, c]
    Returns the scalar mean negative log-likelihood.
    """
    alpha = dist_params["alpha"]
    sigma = dist_params["sigma"]
    mu = dist_params["mu"]
    ng, c = int(num_gaussians), int(output_dim)
    B = alpha.shape[0]
    assert alpha.shape == (B, ng)
    assert sigma.shape == (B, ng)
    assert mu.shape == (B, ng * c)
    assert targets.shape == (B, c)

    norm_const = 1.0 / (2.0 * math.pi) ** (c / 2.0)

    # Batch tile: as large as practical for pipelining, sublane-aligned
    # (multiple of 8) unless it covers the whole batch.
    tb = min(int(block_b), B)
    if tb < B:
        tb = max(8, (tb // 8) * 8)
    num_tiles = pl.cdiv(B, tb)

    kernel = _make_mdn_loss_kernel(ng, c, float(norm_const))

    nll = pl.pallas_call(
        kernel,
        out_shape=jax.ShapeDtypeStruct((B, 1), jnp.float32),
        grid=(num_tiles,),
        in_specs=[
            pl.BlockSpec((tb, ng), lambda i: (i, 0)),        # alpha
            pl.BlockSpec((tb, ng), lambda i: (i, 0)),        # sigma
            pl.BlockSpec((tb, ng * c), lambda i: (i, 0)),    # mu
            pl.BlockSpec((tb, c), lambda i: (i, 0)),         # targets
        ],
        out_specs=pl.BlockSpec((tb, 1), lambda i: (i, 0)),
        compiler_params=pltpu.CompilerParams(
            dimension_semantics=("parallel",)),
    )(alpha, sigma, mu, targets)

    # Final cross-batch reduction (mean) in plain XLA: B floats, negligible.
    return jnp.mean(nll)


def _reference_forward(dist_params, targets, num_gaussians, output_dim):
    """Plain-JAX reference mirroring the torch MDNLoss module."""
    ng, c = int(num_gaussians), int(output_dim)
    alpha = dist_params["alpha"]
    sigma = dist_params["sigma"]
    mu = dist_params["mu"]
    norm_constant = 1.0 / (2.0 * math.pi) ** (c / 2.0)

    reshape_mu = mu.reshape(-1, ng, c)
    reshape_t = jnp.tile(targets, (1, ng)).reshape(-1, ng, c)
    squares = (reshape_mu - reshape_t) ** 2
    norm_sq = jnp.sum(squares, axis=2)
    inv_sigma_sq = 1.0 / (sigma ** 2)
    div = -0.5 * norm_sq * inv_sigma_sq
    sigma_pow = sigma ** c
    final = jnp.exp(div) * norm_constant * (1.0 / sigma_pow)
    weighted = final * alpha
    prob = jnp.sum(weighted, axis=1)
    logprob = -jnp.log(prob)
    return jnp.mean(logprob)


if __name__ == "__main__":
    # Small shapes consistent with the module.
    batch = 64
    num_gaussians = 4
    output_dim = 6

    key = jax.random.PRNGKey(0)
    ka, ks, km, kt = jax.random.split(key, 4)

    # dist_params exactly as the upstream mixture-density head would emit them:
    # alpha is a softmax, sigma is strictly positive, mu is unconstrained.
    alpha = jax.nn.softmax(
        jax.random.normal(ka, (batch, num_gaussians), dtype=jnp.float32), axis=1)
    sigma = jnp.exp(
        0.3 * jax.random.normal(ks, (batch, num_gaussians), dtype=jnp.float32)
    ) + 1e-5
    mu = jax.random.normal(km, (batch, num_gaussians * output_dim),
                           dtype=jnp.float32)
    targets = jax.random.normal(kt, (batch, output_dim), dtype=jnp.float32)

    dist_params = {"alpha": alpha, "sigma": sigma, "mu": mu}

    # block_b=16 -> 4 pipelined, parallel grid steps at this demo size.
    loss = mdn_loss_forward(dist_params, targets, num_gaussians, output_dim,
                            block_b=16)
    loss = jax.block_until_ready(loss)

    ref = _reference_forward(dist_params, targets, num_gaussians, output_dim)
    assert jnp.isfinite(loss), loss
    assert jnp.allclose(loss, ref, atol=1e-5, rtol=1e-5), (loss, ref)

    print("KERNEL_OK")
</pallas_src>

<mosaic_0001>
module attributes {stable_mosaic.version = 11 : i64} {
  func.func @kernel(%arg0: i32, %arg1: memref<16x4xf32, #tpu.memory_space<vmem>>, %arg2: memref<16x4xf32, #tpu.memory_space<vmem>>, %arg3: memref<16x24xf32, #tpu.memory_space<vmem>>, %arg4: memref<16x6xf32, #tpu.memory_space<vmem>>, %arg5: memref<16x1xf32, #tpu.memory_space<vmem>>) attributes {dimension_semantics = [#tpu.dimension_semantics<parallel>], iteration_bounds = array<i64: 4>, scalar_prefetch = 0 : i64, scratch_operands = 0 : i64, tpu.core_type = #tpu.core_type<tc>, window_params = [{transform_indices = @transform_0, window_bounds = array<i64: 16, 4>}, {transform_indices = @transform_1, window_bounds = array<i64: 16, 4>}, {transform_indices = @transform_2, window_bounds = array<i64: 16, 24>}, {transform_indices = @transform_3, window_bounds = array<i64: 16, 6>}, {transform_indices = @transform_4, window_bounds = array<i64: 16, 1>}]} {
    %c0 = arith.constant 0 : index
    %c0_0 = arith.constant 0 : index
    %0 = vector.load %arg4[%c0, %c0_0] : memref<16x6xf32, #tpu.memory_space<vmem>>, vector<16x6xf32>
    %c0_1 = arith.constant 0 : index
    %c0_2 = arith.constant 0 : index
    %1 = vector.load %arg2[%c0_1, %c0_2] : memref<16x4xf32, #tpu.memory_space<vmem>>, vector<16x4xf32>
    %c0_3 = arith.constant 0 : index
    %c0_4 = arith.constant 0 : index
    %2 = vector.load %arg1[%c0_3, %c0_4] : memref<16x4xf32, #tpu.memory_space<vmem>>, vector<16x4xf32>
    %c0_5 = arith.constant 0 : index
    %c0_6 = arith.constant 0 : index
    %3 = vector.load %arg3[%c0_5, %c0_6] : memref<16x24xf32, #tpu.memory_space<vmem>>, vector<16x6xf32>
    %4 = arith.subf %3, %0 : vector<16x6xf32>
    %5 = arith.mulf %4, %4 : vector<16x6xf32>
    %cst = arith.constant dense<0.000000e+00> : vector<16xf32>
    %6 = vector.multi_reduction <add>, %5, %cst [1] : vector<16x6xf32> to vector<16xf32>
    %7 = vector.shape_cast %6 : vector<16xf32> to vector<16x1xf32>
    %c0_7 = arith.constant 0 : index
    %c6 = arith.constant 6 : index
    %8 = vector.load %arg3[%c0_7, %c6] : memref<16x24xf32, #tpu.memory_space<vmem>>, vector<16x6xf32>
    %9 = arith.subf %8, %0 : vector<16x6xf32>
    %10 = arith.mulf %9, %9 : vector<16x6xf32>
    %cst_8 = arith.constant dense<0.000000e+00> : vector<16xf32>
    %11 = vector.multi_reduction <add>, %10, %cst_8 [1] : vector<16x6xf32> to vector<16xf32>
    %12 = vector.shape_cast %11 : vector<16xf32> to vector<16x1xf32>
    %c0_9 = arith.constant 0 : index
    %c12 = arith.constant 12 : index
    %13 = vector.load %arg3[%c0_9, %c12] : memref<16x24xf32, #tpu.memory_space<vmem>>, vector<16x6xf32>
    %14 = arith.subf %13, %0 : vector<16x6xf32>
    %15 = arith.mulf %14, %14 : vector<16x6xf32>
    %cst_10 = arith.constant dense<0.000000e+00> : vector<16xf32>
    %16 = vector.multi_reduction <add>, %15, %cst_10 [1] : vector<16x6xf32> to vector<16xf32>
    %17 = vector.shape_cast %16 : vector<16xf32> to vector<16x1xf32>
    %c0_11 = arith.constant 0 : index
    %c18 = arith.constant 18 : index
    %18 = vector.load %arg3[%c0_11, %c18] : memref<16x24xf32, #tpu.memory_space<vmem>>, vector<16x6xf32>
    %19 = arith.subf %18, %0 : vector<16x6xf32>
    %20 = arith.mulf %19, %19 : vector<16x6xf32>
    %cst_12 = arith.constant dense<0.000000e+00> : vector<16xf32>
    %21 = vector.multi_reduction <add>, %20, %cst_12 [1] : vector<16x6xf32> to vector<16xf32>
    %22 = vector.shape_cast %21 : vector<16xf32> to vector<16x1xf32>
    %23 = tpu.concatenate %7, %12, %17, %22 in 1 : vector<16x1xf32>, vector<16x1xf32>, vector<16x1xf32>, vector<16x1xf32> -> vector<16x4xf32>
    %24 = arith.mulf %1, %1 : vector<16x4xf32>
    %cst_13 = arith.constant 1.000000e+00 : f32
    %25 = vector.broadcast %cst_13 : f32 to vector<16x4xf32>
    %26 = arith.divf %25, %24 : vector<16x4xf32>
    %cst_14 = arith.constant -5.000000e-01 : f32
    %27 = vector.broadcast %cst_14 : f32 to vector<16x4xf32>
    %28 = arith.mulf %27, %23 : vector<16x4xf32>
    %29 = arith.mulf %28, %26 : vector<16x4xf32>
    %30 = arith.mulf %1, %1 : vector<16x4xf32>
    %31 = arith.mulf %30, %1 : vector<16x4xf32>
    %32 = arith.mulf %31, %1 : vector<16x4xf32>
    %33 = arith.mulf %32, %1 : vector<16x4xf32>
    %34 = arith.mulf %33, %1 : vector<16x4xf32>
    %35 = math.exp %29 : vector<16x4xf32>
    %cst_15 = arith.constant 0.00403144164 : f32
    %36 = vector.broadcast %cst_15 : f32 to vector<16x4xf32>
    %37 = arith.mulf %35, %36 : vector<16x4xf32>
    %cst_16 = arith.constant 1.000000e+00 : f32
    %38 = vector.broadcast %cst_16 : f32 to vector<16x4xf32>
    %39 = arith.divf %38, %34 : vector<16x4xf32>
    %40 = arith.mulf %37, %39 : vector<16x4xf32>
    %41 = arith.mulf %40, %2 : vector<16x4xf32>
    %cst_17 = arith.constant dense<0.000000e+00> : vector<16xf32>
    %42 = vector.multi_reduction <add>, %41, %cst_17 [1] : vector<16x4xf32> to vector<16xf32>
    %43 = vector.shape_cast %42 : vector<16xf32> to vector<16x1xf32>
    %44 = math.log %43 : vector<16x1xf32>
    %cst_18 = arith.constant 0.000000e+00 : f32
    %45 = vector.broadcast %cst_18 : f32 to vector<16x1xf32>
    %46 = arith.subf %45, %44 : vector<16x1xf32>
    %c0_19 = arith.constant 0 : index
    %c0_20 = arith.constant 0 : index
    %47 = vector.load %arg5[%c0_19, %c0_20] : memref<16x1xf32, #tpu.memory_space<vmem>>, vector<16x1xf32>
    tpu.vector_store %arg5[%c0_19, %c0_20], %46 {strides = array<i32>} : memref<16x1xf32, #tpu.memory_space<vmem>>, vector<16x1xf32>,
    return
  }
  func.func @transform_0(%arg0: i32) -> (i32, i32) {
    %c0_i32 = arith.constant 0 : i32
    %c0_i32_0 = arith.constant 0 : i32
    return %arg0, %c0_i32 : i32, i32
  }
  func.func @transform_1(%arg0: i32) -> (i32, i32) {
    %c0_i32 = arith.constant 0 : i32
    %c0_i32_0 = arith.constant 0 : i32
    return %arg0, %c0_i32 : i32, i32
  }
  func.func @transform_2(%arg0: i32) -> (i32, i32) {
    %c0_i32 = arith.constant 0 : i32
    %c0_i32_0 = arith.constant 0 : i32
    return %arg0, %c0_i32 : i32, i32
  }
  func.func @transform_3(%arg0: i32) -> (i32, i32) {
    %c0_i32 = arith.constant 0 : i32
    %c0_i32_0 = arith.constant 0 : i32
    return %arg0, %c0_i32 : i32, i32
  }
  func.func @transform_4(%arg0: i32) -> (i32, i32) {
    %c0_i32 = arith.constant 0 : i32
    %c0_i32_0 = arith.constant 0 : i32
    return %arg0, %c0_i32 : i32, i32
  }
}

</mosaic_0001>

<llo_original>
// kernel: tpu_custom_call.1
$region0: #{tpu_custom_call.1}
  #allocation0 [shape = 'u32[]', space=smem, size = 0x4, offset = 0x4, fixed_abs, tag = 'smem constant byte address 0x4 - core index']
  #allocation1 [shape = 'u32[72,128]{1,0:T(1,128)}', space=vmem, size = 0x9000, scoped, tag = 'internal scratch']
  %s0 = inlined_call_operand.vmem [shape: f32[64,4], index: 0, kind: input, shape index: {}]
  %s1 = inlined_call_operand.vmem [shape: f32[64,4], index: 1, kind: input, shape index: {}]
  %s2 = inlined_call_operand.vmem [shape: f32[64,24], index: 2, kind: input, shape index: {}]
  %s3 = inlined_call_operand.vmem [shape: f32[64,6], index: 3, kind: input, shape index: {}]
  %s4 = inlined_call_operand.vmem [shape: f32[64,1], index: 4, kind: output, shape index: {}]
  %s5 = sld [smem:[#allocation0]]
  $region49: #{tpu_custom_call.1} parent=0
    _
  %s7 = ssub.s32 1, %s5
  %s8 = scalar_select 0, %s7, %s5
  loop: start=0, step=1, limit=6
  $region2: #{tpu_custom_call.1} parent=0 // loop_pre_header
    _
  $region3: #{tpu_custom_call.1} parent=0 // loop_header
    %s10 = sphi 0, %s14
    %p11 = scmp.ge.s32.totalorder %s10, 6
    %s20 = sphi 0, %s22
    %s23 = sphi 0, %s20
    %s24 = sphi 0, %s23
    %s40 = sphi 0, %s24
    %s46 = sphi 0, %s48
    %s49 = sphi 0, %s46
    %s50 = sphi 0, %s49
    %s66 = sphi 0, %s50
    %s72 = sphi 0, %s74
    %s75 = sphi 0, %s72
    %s76 = sphi 0, %s75
    %s92 = sphi 0, %s76
    %s98 = sphi 0, %s100
    %s101 = sphi 0, %s98
    %s102 = sphi 0, %s101
    %s118 = sphi 0, %s102
    %s124 = sphi 0, %s126
    %s127 = sphi 0, %s124
    %s128 = sphi 0, %s127
    %s144 = sphi 0, %s128
  $region4: #{tpu_custom_call.1} parent=0 // loop_header_branch
    %13 = sbr.rel (%p11) target = $region8
  $region5: #{tpu_custom_call.1} parent=0 // loop_body
    %s15 = ssub.s32 %s10, 1
    %s16 = ssub.s32 %s10, 2
    %s17 = sadd.s32 %s10, 1
    %s18 = ssub.s32 %s10, %s17
    %p19 = scmp.eq.s32.totalorder %s18, 0
    %s21 = sadd.s32 %s20, 1
    %s22 = scalar_select %p19, %s20, %s21
    %p25 = pneg %p19
    %p26 = scmp.eq.s32.totalorder %s10, 3
    %p27 = por %p25, %p26
    %p28 = scmp.ne.s32.totalorder %s20, %s23
    %p29 = scmp.eq.s32.totalorder %s10, 0
    %p30 = por %p28, %p29
    %p31 = scmp.ne.s32.totalorder %s20, %s23
    %p32 = scmp.eq.s32.totalorder %s15, 3
    %p33 = por %p31, %p32
    %p34 = scmp.ne.s32.totalorder %s23, %s24
    %p35 = scmp.eq.s32.totalorder %s15, 0
    %p36 = por %p34, %p35
    %p37 = scmp.ne.s32.totalorder %s23, %s24
    %p38 = scmp.eq.s32.totalorder %s16, 3
    %p39 = por %p37, %p38
    %p41 = scmp.ne.s32.totalorder %s24, %s40
    %p42 = scmp.eq.s32.totalorder %s16, 0
    %p43 = por %p41, %p42
    %s44 = ssub.s32 %s10, %s17
    %p45 = scmp.eq.s32.totalorder %s44, 0
    %s47 = sadd.s32 %s46, 1
    %s48 = scalar_select %p45, %s46, %s47
    %p51 = pneg %p45
    %p52 = scmp.eq.s32.totalorder %s10, 3
    %p53 = por %p51, %p52
    %p54 = scmp.ne.s32.totalorder %s46, %s49
    %p55 = scmp.eq.s32.totalorder %s10, 0
    %p56 = por %p54, %p55
    %p57 = scmp.ne.s32.totalorder %s46, %s49
    %p58 = scmp.eq.s32.totalorder %s15, 3
    %p59 = por %p57, %p58
    %p60 = scmp.ne.s32.totalorder %s49, %s50
    %p61 = scmp.eq.s32.totalorder %s15, 0
    %p62 = por %p60, %p61
    %p63 = scmp.ne.s32.totalorder %s49, %s50
    %p64 = scmp.eq.s32.totalorder %s16, 3
    %p65 = por %p63, %p64
    %p67 = scmp.ne.s32.totalorder %s50, %s66
    %p68 = scmp.eq.s32.totalorder %s16, 0
    %p69 = por %p67, %p68
    %s70 = ssub.s32 %s10, %s17
    %p71 = scmp.eq.s32.totalorder %s70, 0
    %s73 = sadd.s32 %s72, 1
    %s74 = scalar_select %p71, %s72, %s73
    %p77 = pneg %p71
    %p78 = scmp.eq.s32.totalorder %s10, 3
    %p79 = por %p77, %p78
    %p80 = scmp.ne.s32.totalorder %s72, %s75
    %p81 = scmp.eq.s32.totalorder %s10, 0
    %p82 = por %p80, %p81
    %p83 = scmp.ne.s32.totalorder %s72, %s75
    %p84 = scmp.eq.s32.totalorder %s15, 3
    %p85 = por %p83, %p84
    %p86 = scmp.ne.s32.totalorder %s75, %s76
    %p87 = scmp.eq.s32.totalorder %s15, 0
    %p88 = por %p86, %p87
    %p89 = scmp.ne.s32.totalorder %s75, %s76
    %p90 = scmp.eq.s32.totalorder %s16, 3
    %p91 = por %p89, %p90
    %p93 = scmp.ne.s32.totalorder %s76, %s92
    %p94 = scmp.eq.s32.totalorder %s16, 0
    %p95 = por %p93, %p94
    %s96 = ssub.s32 %s10, %s17
    %p97 = scmp.eq.s32.totalorder %s96, 0
    %s99 = sadd.s32 %s98, 1
    %s100 = scalar_select %p97, %s98, %s99
    %p103 = pneg %p97
    %p104 = scmp.eq.s32.totalorder %s10, 3
    %p105 = por %p103, %p104
    %p106 = scmp.ne.s32.totalorder %s98, %s101
    %p107 = scmp.eq.s32.totalorder %s10, 0
    %p108 = por %p106, %p107
    %p109 = scmp.ne.s32.totalorder %s98, %s101
    %p110 = scmp.eq.s32.totalorder %s15, 3
    %p111 = por %p109, %p110
    %p112 = scmp.ne.s32.totalorder %s101, %s102
    %p113 = scmp.eq.s32.totalorder %s15, 0
    %p114 = por %p112, %p113
    %p115 = scmp.ne.s32.totalorder %s101, %s102
    %p116 = scmp.eq.s32.totalorder %s16, 3
    %p117 = por %p115, %p116
    %p119 = scmp.ne.s32.totalorder %s102, %s118
    %p120 = scmp.eq.s32.totalorder %s16, 0
    %p121 = por %p119, %p120
    %s122 = ssub.s32 %s10, %s17
    %p123 = scmp.eq.s32.totalorder %s122, 0
    %s125 = sadd.s32 %s124, 1
    %s126 = scalar_select %p123, %s124, %s125
    %p129 = pneg %p123
    %p130 = scmp.eq.s32.totalorder %s10, 3
    %p131 = por %p129, %p130
    %p132 = scmp.ne.s32.totalorder %s124, %s127
    %p133 = scmp.eq.s32.totalorder %s10, 0
    %p134 = por %p132, %p133
    %p135 = scmp.ne.s32.totalorder %s124, %s127
    %p136 = scmp.eq.s32.totalorder %s15, 3
    %p137 = por %p135, %p136
    %p138 = scmp.ne.s32.totalorder %s127, %s128
    %p139 = scmp.eq.s32.totalorder %s15, 0
    %p140 = por %p138, %p139
    %p141 = scmp.ne.s32.totalorder %s127, %s128
    %p142 = scmp.eq.s32.totalorder %s16, 3
    %p143 = por %p141, %p142
    %p145 = scmp.ne.s32.totalorder %s128, %s144
    %p146 = scmp.eq.s32.totalorder %s16, 0
    %p147 = por %p145, %p146
    %p148 = scmp.le.s32.totalorder 1, %s10
    %p149 = scmp.lt.s32.totalorder %s10, 5
    %p150 = pnand %p148, %p149
    %p151 = pneg %p150
    // Predicated region
    $region9: #{tpu_custom_call.1} parent=5 // pred_check
      _
    $region10: #{tpu_custom_call.1} parent=5 // pred_check_branch
      %153 = sbr.rel (%p150) target = $region12
    $region11: #{tpu_custom_call.1} parent=5 // pred_region
      %s154 = ssub.s32 %s10, 1
    $region12: #{tpu_custom_call.1} parent=5 // pred_fallthru
      _
    %p155 = scmp.lt.s32.totalorder %s10, 4
    // Predicated region
    $region13: #{tpu_custom_call.1} parent=5 // pred_check
      %p156 = pneg %p155
    $region14: #{tpu_custom_call.1} parent=5 // pred_check_branch
      %158 = sbr.rel (%p156) target = $region16
    $region15: #{tpu_custom_call.1} parent=5 // pred_region
      // Predicated region
      $region17: #{tpu_custom_call.1} parent=15 // pred_check
        %p159 = pneg %p30
      $region18: #{tpu_custom_call.1} parent=15 // pred_check_branch
        %161 = sbr.rel (%p159) target = $region20
      $region19: #{tpu_custom_call.1} parent=15 // pred_region
        %s162 = smul.u32 2, %s10
        %p163 = scmp.lt.s32.totalorder %s162, 7
        %s164 = scalar_select %p163, %s162, 7
        %s165 = smul.addr %s164, 8
        %s166 = scalar_lea.vmem %s0, %s165
        %s167 = smul.u32 2, %s10
      $region20: #{tpu_custom_call.1} parent=15 // pred_fallthru
        _
      // Predicated region
      $region21: #{tpu_custom_call.1} parent=15 // pred_check
        %p168 = pneg %p56
      $region22: #{tpu_custom_call.1} parent=15 // pred_check_branch
        %170 = sbr.rel (%p168) target = $region24
      $region23: #{tpu_custom_call.1} parent=15 // pred_region
        %s171 = smul.u32 2, %s10
        %p172 = scmp.lt.s32.totalorder %s171, 7
        %s173 = scalar_select %p172, %s171, 7
        %s174 = smul.addr %s173, 8
        %s175 = scalar_lea.vmem %s1, %s174
        %s176 = smul.u32 2, %s10
      $region24: #{tpu_custom_call.1} parent=15 // pred_fallthru
        _
      // Predicated region
      $region25: #{tpu_custom_call.1} parent=15 // pred_check
        %p177 = pneg %p82
      $region26: #{tpu_custom_call.1} parent=15 // pred_check_branch
        %179 = sbr.rel (%p177) target = $region28
      $region27: #{tpu_custom_call.1} parent=15 // pred_region
        %s180 = smul.u32 2, %s10
        %p181 = scmp.lt.s32.totalorder %s180, 7
        %s182 = scalar_select %p181, %s180, 7
        %s183 = smul.addr %s182, 8
        %s184 = scalar_lea.vmem %s2, %s183
        %s185 = smul.u32 2, %s10
      $region28: #{tpu_custom_call.1} parent=15 // pred_fallthru
        _
      // Predicated region
      $region29: #{tpu_custom_call.1} parent=15 // pred_check
        %p186 = pneg %p108
      $region30: #{tpu_custom_call.1} parent=15 // pred_check_branch
        %188 = sbr.rel (%p186) target = $region32
      $region31: #{tpu_custom_call.1} parent=15 // pred_region
        %s189 = smul.u32 2, %s10
        %p190 = scmp.lt.s32.totalorder %s189, 7
        %s191 = scalar_select %p190, %s189, 7
        %s192 = smul.addr %s191, 8
        %s193 = scalar_lea.vmem %s3, %s192
        %s194 = smul.u32 2, %s10
      $region32: #{tpu_custom_call.1} parent=15 // pred_fallthru
        _
    $region16: #{tpu_custom_call.1} parent=5 // pred_fallthru
      _
    %p195 = scmp.le.s32.totalorder 1, %s10
    %p196 = scmp.lt.s32.totalorder %s10, 5
    %p197 = pnand %p195, %p196
    %p198 = pneg %p197
    // Predicated region
    $region33: #{tpu_custom_call.1} parent=5 // pred_check
      _
    $region34: #{tpu_custom_call.1} parent=5 // pred_check_branch
      %200 = sbr.rel (%p197) target = $region36
    $region35: #{tpu_custom_call.1} parent=5 // pred_region
      %s201 = ssub.s32 %s10, 1
      %s202 = smul.u32 2, %s15
      %p203 = scmp.lt.s32.totalorder %s202, 7
      %s204 = scalar_select %p203, %s202, 7
      %s205 = smul.addr %s204, 8
      %s206 = scalar_lea.vmem %s0, %s205
      %p207 = pneg %p36
      %p208 = pneg %p33
      %s209 = smul.u32 2, %s15
      %p210 = scmp.lt.s32.totalorder %s209, 7
      %s211 = scalar_select %p210, %s209, 7
      %s212 = smul.addr %s211, 8
      %s213 = scalar_lea.vmem %s1, %s212
      %p214 = pneg %p62
      %p215 = pneg %p59
      %s216 = smul.u32 2, %s15
      %p217 = scmp.lt.s32.totalorder %s216, 7
      %s218 = scalar_select %p217, %s216, 7
      %s219 = smul.addr %s218, 8
      %s220 = scalar_lea.vmem %s2, %s219
      %p221 = pneg %p88
      %p222 = pneg %p85
      %s223 = smul.u32 2, %s15
      %p224 = scmp.lt.s32.totalorder %s223, 7
      %s225 = scalar_select %p224, %s223, 7
      %s226 = smul.addr %s225, 8
      %s227 = scalar_lea.vmem %s3, %s226
      %p228 = pneg %p114
      %p229 = pneg %p111
      %p230 = pneg %p140
      %p231 = pneg %p137
      %s232 = smul.u32 2, %s15
      %p233 = scmp.lt.s32.totalorder %s232, 7
      %s234 = scalar_select %p233, %s232, 7
      %s235 = smul.addr %s234, 8
      %s236 = scalar_lea.vmem %s4, %s235
      %s237 = smul.u32 2, %s15
      %p238 = scmp.lt.s32.totalorder %s237, 7
      %s239 = scalar_select %p238, %s237, 7
      %s240 = smul.addr %s239, 8
      %s241 = scalar_lea.vmem %s0, %s240
      %s242 = smul.u32 2, %s15
      %s243 = smul.u32 2, %s15
      %p244 = scmp.lt.s32.totalorder %s243, 7
      %s245 = scalar_select %p244, %s243, 7
      %s246 = smul.addr %s245, 8
      %s247 = scalar_lea.vmem %s1, %s246
      %s248 = smul.u32 2, %s15
      %s249 = smul.u32 2, %s15
      %p250 = scmp.lt.s32.totalorder %s249, 7
      %s251 = scalar_select %p250, %s249, 7
      %s252 = smul.addr %s251, 8
      %s253 = scalar_lea.vmem %s2, %s252
      %s254 = smul.u32 2, %s15
      %s255 = smul.u32 2, %s15
      %p256 = scmp.lt.s32.totalorder %s255, 7
      %s257 = scalar_select %p256, %s255, 7
      %s258 = smul.addr %s257, 8
      %s259 = scalar_lea.vmem %s3, %s258
      %s260 = smul.u32 2, %s15
      %s261 = smul.u32 2, %s15
      %p262 = scmp.lt.s32.totalorder %s261, 7
      %s263 = scalar_select %p262, %s261, 7
      %s264 = smul.addr %s263, 8
      %s265 = scalar_lea.vmem %s4, %s264
      %s266 = smul.u32 2, %s15
      %v267 = vld [vmem:[%s259] sm:$0xff]
      %v268 = vld [vmem:[%s259 + $0x8] sm:$0xff]
      %v269 = vld [vmem:[%s247] sm:$0xff]
      %v270 = vld [vmem:[%s247 + $0x8] sm:$0xff]
      %v271 = vld [vmem:[%s241] sm:$0xff]
      %v272 = vld [vmem:[%s241 + $0x8] sm:$0xff]
      %v273 = vld [vmem:[%s253] sm:$0xff]
      %v274 = vld [vmem:[%s253 + $0x8] sm:$0xff]
      %v275 = vsub.f32 %v273, %v267
      %v276 = vsub.f32 %v274, %v268
      %v277 = vmul.f32 %v275, %v275
      %v278 = vmul.f32 %v276, %v276
      %vm279 = vcmask 48128
      %v280 = vsel %vm279, %v277, 0.0
      %281 = vadd.xlane.f32.xlu0 %v280
      %v282 = vpop.xlane.xlu0 %281
      %v283 = vsel %vm279, %v278, 0.0
      %284 = vadd.xlane.f32.xlu0 %v283
      %v285 = vpop.xlane.xlu0 %284
      %288 = vrot.lane.b32.xlu0 %v267, 6
      %v289 = vpop.permute.xlu0 %288
      %290 = vrot.lane.b32.xlu0 %v268, 6
      %v291 = vpop.permute.xlu0 %290
      %v294 = vsub.f32 %v273, %v289
      %v295 = vsub.f32 %v274, %v291
      %v296 = vmul.f32 %v294, %v294
      %v297 = vmul.f32 %v295, %v295
      %300 = vrot.lane.b32.xlu0 %v296, 122
      %v301 = vpop.permute.xlu0 %300
      %302 = vrot.lane.b32.xlu0 %v297, 122
      %v303 = vpop.permute.xlu0 %302
      %v306 = vsel %vm279, %v301, 0.0
      %307 = vadd.xlane.f32.xlu0 %v306
      %v308 = vpop.xlane.xlu0 %307
      %v309 = vsel %vm279, %v303, 0.0
      %310 = vadd.xlane.f32.xlu0 %v309
      %v311 = vpop.xlane.xlu0 %310
      %312 = vrot.lane.b32.xlu0 %v267, 12
      %v313 = vpop.permute.xlu0 %312
      %314 = vrot.lane.b32.xlu0 %v268, 12
      %v315 = vpop.permute.xlu0 %314
      %v318 = vsub.f32 %v273, %v313
      %v319 = vsub.f32 %v274, %v315
      %v320 = vmul.f32 %v318, %v318
      %v321 = vmul.f32 %v319, %v319
      %324 = vrot.lane.b32.xlu0 %v320, 116
      %v325 = vpop.permute.xlu0 %324
      %326 = vrot.lane.b32.xlu0 %v321, 116
      %v327 = vpop.permute.xlu0 %326
      %v330 = vsel %vm279, %v325, 0.0
      %331 = vadd.xlane.f32.xlu0 %v330
      %v332 = vpop.xlane.xlu0 %331
      %v333 = vsel %vm279, %v327, 0.0
      %334 = vadd.xlane.f32.xlu0 %v333
      %v335 = vpop.xlane.xlu0 %334
      %336 = vrot.lane.b32.xlu0 %v267, 18
      %v337 = vpop.permute.xlu0 %336
      %338 = vrot.lane.b32.xlu0 %v268, 18
      %v339 = vpop.permute.xlu0 %338
      %v342 = vsub.f32 %v273, %v337
      %v343 = vsub.f32 %v274, %v339
      %v344 = vmul.f32 %v342, %v342
      %v345 = vmul.f32 %v343, %v343
      %348 = vrot.lane.b32.xlu0 %v344, 110
      %v349 = vpop.permute.xlu0 %348
      %350 = vrot.lane.b32.xlu0 %v345, 110
      %v351 = vpop.permute.xlu0 %350
      %v354 = vsel %vm279, %v349, 0.0
      %355 = vadd.xlane.f32.xlu0 %v354
      %v356 = vpop.xlane.xlu0 %355
      %v357 = vsel %vm279, %v351, 0.0
      %358 = vadd.xlane.f32.xlu0 %v357
      %v359 = vpop.xlane.xlu0 %358
      %vm360 = vcmask 7168
      %v361 = vsel %vm360, %v282, %v308
      %v362 = vsel %vm360, %v285, %v311
      %vm363 = vcmask 15360
      %v364 = vsel %vm363, %v361, %v332
      %v365 = vsel %vm363, %v362, %v335
      %vm366 = vcmask 23552
      %v367 = vsel %vm366, %v364, %v356
      %v368 = vsel %vm366, %v365, %v359
      %v369 = vmul.f32 %v269, %v269
      %v370 = vmul.f32 %v270, %v270
      %v371 = vrcp.pop %v369
      %v372 = vmul.f32 %v369, %v371
      %v373 = vsub.f32 1.0, %v372
      %v374 = vmul.f32 %v371, %v373
      %v375 = vadd.f32 %v371, %v374
      %vm376 = vweird.f32 %v369
      %vm377 = vweird.f32 %v371
      %vm378 = vmor %vm376, %vm377
      %v379 = vsel %vm378, %v371, %v375
      %v380 = vand.u32 2147483647, %v369
      %vm381 = vcmp.eq.f32.partialorder %v380, 8.507059e+37
      %v382 = vand.u32 %v369, 2147483648
      %v383 = vor.u32 1.1754944e-38, %v382
      %v384 = vsel %vm381, %v383, %v379
      %v385 = vmul.f32 1.0, %v384
      %v386 = vrcp.pop %v370
      %v387 = vmul.f32 %v370, %v386
      %v388 = vsub.f32 1.0, %v387
      %v389 = vmul.f32 %v386, %v388
      %v390 = vadd.f32 %v386, %v389
      %vm391 = vweird.f32 %v370
      %vm392 = vweird.f32 %v386
      %vm393 = vmor %vm391, %vm392
      %v394 = vsel %vm393, %v386, %v390
      %v395 = vand.u32 2147483647, %v370
      %vm396 = vcmp.eq.f32.partialorder %v395, 8.507059e+37
      %v397 = vand.u32 %v370, 2147483648
      %v398 = vor.u32 1.1754944e-38, %v397
      %v399 = vsel %vm396, %v398, %v394
      %v400 = vmul.f32 1.0, %v399
      %v401 = vmul.f32 %v367, -0.5
      %v402 = vmul.f32 %v368, -0.5
      %v403 = vmul.f32 %v401, %v385
      %v404 = vmul.f32 %v402, %v400
      %v405 = vmul.f32 %v369, %v269
      %v406 = vmul.f32 %v370, %v270
      %v407 = vmul.f32 %v405, %v269
      %v408 = vmul.f32 %v406, %v270
      %v409 = vmul.f32 %v407, %v269
      %v410 = vmul.f32 %v408, %v270
      %v411 = vmul.f32 %v409, %v269
      %v412 = vmul.f32 %v410, %v270
      %v413 = vmul.f32 %v403, 1.442695
      %v414 = vpow.pop %v413
      %v415 = vmul.f32 %v404, 1.442695
      %v416 = vpow.pop %v415
      %v417 = vmul.f32 %v414, 0.0040314416
      %v418 = vmul.f32 %v416, 0.0040314416
      %v419 = vrcp.pop %v411
      %v420 = vmul.f32 %v411, %v419
      %v421 = vsub.f32 1.0, %v420
      %v422 = vmul.f32 %v419, %v421
      %v423 = vadd.f32 %v419, %v422
      %vm424 = vweird.f32 %v411
      %vm425 = vweird.f32 %v419
      %vm426 = vmor %vm424, %vm425
      %v427 = vsel %vm426, %v419, %v423
      %v428 = vand.u32 2147483647, %v411
      %vm429 = vcmp.eq.f32.partialorder %v428, 8.507059e+37
      %v430 = vand.u32 %v411, 2147483648
      %v431 = vor.u32 1.1754944e-38, %v430
      %v432 = vsel %vm429, %v431, %v427
      %v433 = vmul.f32 1.0, %v432
      %v434 = vrcp.pop %v412
      %v435 = vmul.f32 %v412, %v434
      %v436 = vsub.f32 1.0, %v435
      %v437 = vmul.f32 %v434, %v436
      %v438 = vadd.f32 %v434, %v437
      %vm439 = vweird.f32 %v412
      %vm440 = vweird.f32 %v434
      %vm441 = vmor %vm439, %vm440
      %v442 = vsel %vm441, %v434, %v438
      %v443 = vand.u32 2147483647, %v412
      %vm444 = vcmp.eq.f32.partialorder %v443, 8.507059e+37
      %v445 = vand.u32 %v412, 2147483648
      %v446 = vor.u32 1.1754944e-38, %v445
      %v447 = vsel %vm444, %v446, %v442
      %v448 = vmul.f32 1.0, %v447
      %v449 = vmul.f32 %v417, %v433
      %v450 = vmul.f32 %v418, %v448
      %v451 = vmul.f32 %v449, %v271
      %v452 = vmul.f32 %v450, %v272
      %vm453 = vcmask 31744
      %v454 = vsel %vm453, %v451, 0.0
      %455 = vadd.xlane.f32.xlu0 %v454
      %v456 = vpop.xlane.xlu0 %455
      %v457 = vsel %vm453, %v452, 0.0
      %458 = vadd.xlane.f32.xlu0 %v457
      %v459 = vpop.xlane.xlu0 %458
      %v460 = vlog2.pop %v456
      %v461 = vmul.f32 %v460, 0.6931472
      %v462 = vlog2.pop %v459
      %v463 = vmul.f32 %v462, 0.6931472
      %v464 = vsub.f32 0.0, %v461
      %v465 = vsub.f32 0.0, %v463
      %466 = vst.msk [vmem:[%s265] sm:$0xff] %vm360, %v464
      %467 = vst.msk [vmem:[%s265 + $0x8] sm:$0xff] %vm360, %v465
      %s468 = smul.u32 2, %s15
      %p469 = scmp.lt.s32.totalorder %s468, 7
      %s470 = scalar_select %p469, %s468, 7
      %s471 = smul.addr %s470, 8
      %s472 = scalar_lea.vmem %s4, %s471
      // Predicated region
      $region37: #{tpu_custom_call.1} parent=35 // pred_check
        %p473 = pneg %p137
      $region38: #{tpu_custom_call.1} parent=35 // pred_check_branch
        %475 = sbr.rel (%p473) target = $region40
      $region39: #{tpu_custom_call.1} parent=35 // pred_region
        %s476 = smul.u32 2, %s15
      $region40: #{tpu_custom_call.1} parent=35 // pred_fallthru
        _
    $region36: #{tpu_custom_call.1} parent=5 // pred_fallthru
      _
    %p477 = scmp.le.s32.totalorder 2, %s10
    // Predicated region
    $region41: #{tpu_custom_call.1} parent=5 // pred_check
      %p478 = pneg %p477
    $region42: #{tpu_custom_call.1} parent=5 // pred_check_branch
      %480 = sbr.rel (%p478) target = $region44
    $region43: #{tpu_custom_call.1} parent=5 // pred_region
      %s481 = ssub.s32 %s10, 2
      // Predicated region
      $region45: #{tpu_custom_call.1} parent=43 // pred_check
        %p482 = pneg %p143
      $region46: #{tpu_custom_call.1} parent=43 // pred_check_branch
        %484 = sbr.rel (%p482) target = $region48
      $region47: #{tpu_custom_call.1} parent=43 // pred_region
        %s485 = smul.u32 2, %s16
        %p486 = scmp.lt.s32.totalorder %s485, 7
        %s487 = scalar_select %p486, %s485, 7
        %s488 = smul.addr %s487, 8
        %s489 = scalar_lea.vmem %s4, %s488
      $region48: #{tpu_custom_call.1} parent=43 // pred_fallthru
        _
    $region44: #{tpu_custom_call.1} parent=5 // pred_fallthru
      _
  $region6: #{tpu_custom_call.1} parent=0 // loop_footer
    %s14 = sadd.s32 1, %s10
  $region7: #{tpu_custom_call.1} parent=0 // loop_footer_branch
    %9 = sbr.rel target = $region3
  $region8: #{tpu_custom_call.1} parent=0 // loop_exit
    _

</llo_original>
